<compile_context>
chip_gen: v6e
topology: v6e:2x2x1
jax: 0.10.0
libtpu: 0.0.40
codegen_flags: <defaults>
</compile_context>

<pallas_src>
import jax
import jax.numpy as jnp
from jax.experimental import pallas as pl
from jax.experimental.pallas import tpu as pltpu


def _linear_kernel(w_ref, x_ref, o_ref):
    # w_ref: (2,)        f32 in SMEM (scalar-prefetched weights)
    # x_ref: (2, TILE)   f32 in VMEM (batch on the lane axis)
    # o_ref: (1, TILE)   f32 in VMEM
    w0 = w_ref[0]
    w1 = w_ref[1]
    # Pure VPU: scalar * row + scalar * row.  No MXU push/drain, no relayout.
    o_ref[...] = w0 * x_ref[0:1, :] + w1 * x_ref[1:2, :]


def linear_advection_forward(x, weight, *, tile=131072):
    """x: (N, 2) f32, weight: (1, 2) f32 (PyTorch Linear layout) -> (N, 1) f32."""
    n, k = x.shape
    assert k == 2 and weight.shape == (1, k)
    assert tile % 128 == 0, "tile must be a multiple of 128 (lane width)"

    # Shrink the tile for small batches so we never DMA mostly-padding tiles,
    # while keeping it a multiple of the 128-lane width.
    n_round = ((n + 127) // 128) * 128
    eff_tile = min(tile, n_round)
    num_tiles = pl.cdiv(n_round, eff_tile)
    n_pad = num_tiles * eff_tile

    # Lane-dense layout: (N, 2) -> (2, N), pad lane axis to a tile multiple.
    # (Wrapper-side layout plumbing only; the hot loop lives in the kernel.)
    x_t = x.T                                          # (2, n)
    if n_pad != n:
        x_t = jnp.pad(x_t, ((0, 0), (0, n_pad - n)))   # padded lanes dropped below
    w = weight.reshape(2)                              # (2,) scalars for SMEM

    out = pl.pallas_call(
        _linear_kernel,
        out_shape=jax.ShapeDtypeStruct((1, n_pad), x.dtype),
        grid_spec=pltpu.PrefetchScalarGridSpec(
            num_scalar_prefetch=1,                     # weights land in SMEM
            grid=(num_tiles,),
            # index_maps receive the prefetch ref as a trailing positional arg.
            in_specs=[pl.BlockSpec((2, eff_tile), lambda i, w_ref: (0, i))],
            out_specs=pl.BlockSpec((1, eff_tile), lambda i, w_ref: (0, i)),
        ),
        compiler_params=pltpu.CompilerParams(
            # Batch tiles are independent -> shard across TCs on v7x megacore.
            dimension_semantics=("parallel",),
        ),
    )(w, x_t)                                          # (1, n_pad)

    # Back to the PyTorch (N, 1) layout, dropping padded lanes.
    return out[:, :n].T


if __name__ == "__main__":
    key = jax.random.PRNGKey(0)
    k_w, k_x = jax.random.split(key)

    # Deterministic parameter init matching torch.nn.Linear(2, 1, bias=False):
    # U(-1/sqrt(fan_in), 1/sqrt(fan_in)) with fan_in = 2.
    bound = 1.0 / jnp.sqrt(2.0)
    weight = jax.random.uniform(k_w, (1, 2), jnp.float32, minval=-bound, maxval=bound)

    # Small example batch: N not a multiple of 128 exercises padding, and a
    # small explicit tile exercises a multi-step grid.
    n = 300
    x = jax.random.normal(k_x, (n, 2), jnp.float32)

    y = linear_advection_forward(x, weight, tile=128)
    y = jax.block_until_ready(y)

    # Correctness check against the plain-JAX reference of x @ W.T.
    y_ref = x @ weight.T
    assert y.shape == (n, 1)
    assert jnp.allclose(y, y_ref, atol=1e-5, rtol=1e-5)

    print("KERNEL_OK")
</pallas_src>

<mosaic_0001>
module attributes {stable_mosaic.version = 11 : i64} {
  func.func @_linear_kernel(%arg0: i32, %arg1: memref<2xf32, #tpu.memory_space<smem>>, %arg2: memref<2x128xf32, #tpu.memory_space<vmem>>, %arg3: memref<1x128xf32, #tpu.memory_space<vmem>>) attributes {dimension_semantics = [#tpu.dimension_semantics<parallel>], iteration_bounds = array<i64: 3>, scalar_prefetch = 1 : i64, scratch_operands = 0 : i64, tpu.core_type = #tpu.core_type<tc>, window_params = [{transform_indices = @transform_0, window_bounds = array<i64: 2, 128>}, {transform_indices = @transform_1, window_bounds = array<i64: 1, 128>}]} {
    %c0 = arith.constant 0 : index
    %0 = memref.load %arg1[%c0] : memref<2xf32, #tpu.memory_space<smem>>
    %c1 = arith.constant 1 : index
    %1 = memref.load %arg1[%c1] : memref<2xf32, #tpu.memory_space<smem>>
    %c0_0 = arith.constant 0 : index
    %c0_1 = arith.constant 0 : index
    %2 = vector.load %arg2[%c0_0, %c0_1] : memref<2x128xf32, #tpu.memory_space<vmem>>, vector<1x128xf32>
    %3 = vector.broadcast %0 : f32 to vector<1x128xf32>
    %4 = arith.mulf %3, %2 : vector<1x128xf32>
    %c1_2 = arith.constant 1 : index
    %c0_3 = arith.constant 0 : index
    %5 = vector.load %arg2[%c1_2, %c0_3] : memref<2x128xf32, #tpu.memory_space<vmem>>, vector<1x128xf32>
    %6 = vector.broadcast %1 : f32 to vector<1x128xf32>
    %7 = arith.mulf %6, %5 : vector<1x128xf32>
    %8 = arith.addf %4, %7 : vector<1x128xf32>
    %c0_4 = arith.constant 0 : index
    %c0_5 = arith.constant 0 : index
    %9 = vector.load %arg3[%c0_4, %c0_5] : memref<1x128xf32, #tpu.memory_space<vmem>>, vector<1x128xf32>
    tpu.vector_store %arg3[%c0_4, %c0_5], %8 {strides = array<i32>} : memref<1x128xf32, #tpu.memory_space<vmem>>, vector<1x128xf32>,
    return
  }
  func.func @transform_0(%arg0: i32, %arg1: memref<2xf32, #tpu.memory_space<smem>>) -> (i32, i32) {
    %c0_i32 = arith.constant 0 : i32
    %c0_i32_0 = arith.constant 0 : i32
    return %c0_i32, %arg0 : i32, i32
  }
  func.func @transform_1(%arg0: i32, %arg1: memref<2xf32, #tpu.memory_space<smem>>) -> (i32, i32) {
    %c0_i32 = arith.constant 0 : i32
    %c0_i32_0 = arith.constant 0 : i32
    return %c0_i32, %arg0 : i32, i32
  }
}

</mosaic_0001>

<llo_original>
// kernel: tpu_custom_call.1
$region0: #{tpu_custom_call.1}
  #allocation0 [shape = 'u32[]', space=smem, size = 0x4, offset = 0x4, fixed_abs, tag = 'smem constant byte address 0x4 - core index']
  #allocation1 [shape = 'u32[144,128]{1,0:T(1,128)}', space=vmem, size = 0x12000, scoped, tag = 'internal scratch']
  #allocation2 [shape = 's32[1]{0}', space=sflag, size = 0x4, scoped, tag = 'scoped memory for tpu_custom_call.1']
  #allocation3 [shape = 'u8[512]{0}', space=smem, size = 0x200, scoped, tag = 'prefetched SMEM operand 0']
  %s0 = inlined_call_operand.hbm [shape: f32[2], index: 0, kind: input, shape index: {}]
  %s1 = inlined_call_operand.hbm [shape: f32[2,384], index: 1, kind: input, shape index: {}]
  %s2 = inlined_call_operand.hbm [shape: f32[1,384], index: 2, kind: output, shape index: {}]
  %s3 = sld [smem:[#allocation0]]
  $region41: #{tpu_custom_call.1} parent=0
    _
  %s5 = ssub.s32 1, %s3
  %s6 = scalar_select 0, %s5, %s3
  %8 = dma.hbm_to_smem %s0, 16, [#allocation3], [#allocation2]
  %9 = dma.done [#allocation2], 16
  %10 = sfence
  $region1: #{tpu_custom_call.1} parent=0
    #allocation4 [shape = 'u8[2048]{0}', space=vmem, size = 0x800, scoped, tag = 'input window, operand 1']
    #allocation5 [shape = 's32[2]{0}', space=sflag, size = 0x8, scoped, tag = 'scoped memory for tpu_custom_call.1']
    #allocation6 [shape = 's32[2]{0}', space=sflag, size = 0x8, scoped, tag = 'scoped memory for tpu_custom_call.1']
    #allocation7 [shape = 'u8[1024]{0}', space=vmem, size = 0x400, scoped, tag = 'output window, operand 0']
    %11 = vsyncpa [#allocation5], 0
    %s12 = scalar_lea.sflag [#allocation5], 1
    %13 = vsyncpa %s12, 0
    %14 = vsyncpa [#allocation6], 0
    %s15 = scalar_lea.sflag [#allocation6], 1
    %16 = vsyncpa %s15, 0
    loop: start=0, step=1, limit=5
    $region2: #{tpu_custom_call.1} parent=1 // loop_pre_header
      _
    $region3: #{tpu_custom_call.1} parent=1 // loop_header
      %s18 = sphi 0, %s22
      %p19 = scmp.ge.s32.totalorder %s18, 5
      %s28 = sphi 0, %s30
      %s31 = sphi 0, %s28
      %s32 = sphi 0, %s31
      %s48 = sphi 0, %s32
      %s54 = sphi 0, %s56
      %s57 = sphi 0, %s54
      %s58 = sphi 0, %s57
      %s74 = sphi 0, %s58
    $region4: #{tpu_custom_call.1} parent=1 // loop_header_branch
      %21 = sbr.rel (%p19) target = $region8
    $region5: #{tpu_custom_call.1} parent=1 // loop_body
      %s23 = ssub.s32 %s18, 1
      %s24 = ssub.s32 %s18, 2
      %s25 = sadd.s32 %s18, 1
      %s26 = ssub.s32 %s18, %s25
      %p27 = scmp.eq.s32.totalorder %s26, 0
      %s29 = sadd.s32 %s28, 1
      %s30 = scalar_select %p27, %s28, %s29
      %p33 = pneg %p27
      %p34 = scmp.eq.s32.totalorder %s18, 2
      %p35 = por %p33, %p34
      %p36 = scmp.ne.s32.totalorder %s28, %s31
      %p37 = scmp.eq.s32.totalorder %s18, 0
      %p38 = por %p36, %p37
      %p39 = scmp.ne.s32.totalorder %s28, %s31
      %p40 = scmp.eq.s32.totalorder %s23, 2
      %p41 = por %p39, %p40
      %p42 = scmp.ne.s32.totalorder %s31, %s32
      %p43 = scmp.eq.s32.totalorder %s23, 0
      %p44 = por %p42, %p43
      %p45 = scmp.ne.s32.totalorder %s31, %s32
      %p46 = scmp.eq.s32.totalorder %s24, 2
      %p47 = por %p45, %p46
      %p49 = scmp.ne.s32.totalorder %s32, %s48
      %p50 = scmp.eq.s32.totalorder %s24, 0
      %p51 = por %p49, %p50
      %s52 = ssub.s32 %s18, %s25
      %p53 = scmp.eq.s32.totalorder %s52, 0
      %s55 = sadd.s32 %s54, 1
      %s56 = scalar_select %p53, %s54, %s55
      %p59 = pneg %p53
      %p60 = scmp.eq.s32.totalorder %s18, 2
      %p61 = por %p59, %p60
      %p62 = scmp.ne.s32.totalorder %s54, %s57
      %p63 = scmp.eq.s32.totalorder %s18, 0
      %p64 = por %p62, %p63
      %p65 = scmp.ne.s32.totalorder %s54, %s57
      %p66 = scmp.eq.s32.totalorder %s23, 2
      %p67 = por %p65, %p66
      %p68 = scmp.ne.s32.totalorder %s57, %s58
      %p69 = scmp.eq.s32.totalorder %s23, 0
      %p70 = por %p68, %p69
      %p71 = scmp.ne.s32.totalorder %s57, %s58
      %p72 = scmp.eq.s32.totalorder %s24, 2
      %p73 = por %p71, %p72
      %p75 = scmp.ne.s32.totalorder %s58, %s74
      %p76 = scmp.eq.s32.totalorder %s24, 0
      %p77 = por %p75, %p76
      %p78 = scmp.le.s32.totalorder 1, %s18
      %p79 = scmp.lt.s32.totalorder %s18, 4
      %p80 = pnand %p78, %p79
      %p81 = pneg %p80
      // Predicated region
      $region9: #{tpu_custom_call.1} parent=5 // pred_check
        _
      $region10: #{tpu_custom_call.1} parent=5 // pred_check_branch
        %83 = sbr.rel (%p80) target = $region12
      $region11: #{tpu_custom_call.1} parent=5 // pred_region
        %s84 = ssub.s32 %s18, 1
      $region12: #{tpu_custom_call.1} parent=5 // pred_fallthru
        _
      %p85 = scmp.lt.s32.totalorder %s18, 3
      // Predicated region
      $region13: #{tpu_custom_call.1} parent=5 // pred_check
        %p86 = pneg %p85
      $region14: #{tpu_custom_call.1} parent=5 // pred_check_branch
        %88 = sbr.rel (%p86) target = $region16
      $region15: #{tpu_custom_call.1} parent=5 // pred_region
        // Predicated region
        $region17: #{tpu_custom_call.1} parent=15 // pred_check
          %p89 = pneg %p38
        $region18: #{tpu_custom_call.1} parent=15 // pred_check_branch
          %91 = sbr.rel (%p89) target = $region20
        $region19: #{tpu_custom_call.1} parent=15 // pred_region
          %s92 = sand.u32 %s28, 1
          %s93 = scalar_lea.sflag [#allocation5], %s92
          %s94 = sand.u32 %s28, 1
          %s95 = smul.addr %s94, 2
          %s96 = scalar_lea.vmem [#allocation4], %s95
          %s98 = ssub.s32 32, 32
          %99 = vsyncadd %s93, %s98
          %s100 = smul.addr %s18, 32
          %s101 = scalar_lea.hbm %s1, %s100
          %s103 = sshll.u32 %s96, 4
          %s104 = int_to_ptr.vmem [resolvable:$true] %s103
          %106 = dma.hbm_to_vmem [thread:$0]  %s101, 32, %s104, %s93
        $region20: #{tpu_custom_call.1} parent=15 // pred_fallthru
          _
      $region16: #{tpu_custom_call.1} parent=5 // pred_fallthru
        _
      %p107 = scmp.le.s32.totalorder 1, %s18
      %p108 = scmp.lt.s32.totalorder %s18, 4
      %p109 = pnand %p107, %p108
      %p110 = pneg %p109
      // Predicated region
      $region21: #{tpu_custom_call.1} parent=5 // pred_check
        _
      $region22: #{tpu_custom_call.1} parent=5 // pred_check_branch
        %112 = sbr.rel (%p109) target = $region24
      $region23: #{tpu_custom_call.1} parent=5 // pred_region
        %s113 = ssub.s32 %s18, 1
        %s114 = sand.u32 %s31, 1
        %s115 = scalar_lea.sflag [#allocation5], %s114
        %s116 = sand.u32 %s31, 1
        %s117 = smul.addr %s116, 2
        %s118 = scalar_lea.vmem [#allocation4], %s117
        // Predicated region
        $region25: #{tpu_custom_call.1} parent=23 // pred_check
          %p119 = pneg %p44
        $region26: #{tpu_custom_call.1} parent=23 // pred_check_branch
          %121 = sbr.rel (%p119) target = $region28
        $region27: #{tpu_custom_call.1} parent=23 // pred_region
          %122 = dma.done %s115, 32
        $region28: #{tpu_custom_call.1} parent=23 // pred_fallthru
          _
        %s123 = sand.u32 %s31, 1
        %s124 = scalar_lea.sflag [#allocation5], %s123
        %s125 = sand.u32 %s31, 1
        %s126 = smul.addr %s125, 2
        %s127 = scalar_lea.vmem [#allocation4], %s126
        %p128 = pneg %p44
        %p129 = pneg %p41
        %p130 = pneg %p70
        %p131 = pneg %p67
        %s132 = sand.u32 %s57, 1
        %s133 = scalar_lea.sflag [#allocation6], %s132
        %s134 = sand.u32 %s57, 1
        %s135 = scalar_lea.vmem [#allocation7], %s134
        %s136 = sld [smem:[#allocation3]]
        %s137 = sld [smem:[#allocation3 + $0x1]]
        %v138 = vld [vmem:[%s118] sm:$0x1]
        %v139 = vstv %s136
        %v140 = vmul.f32 %v139, %v138
        %v141 = vld [vmem:[%s118 + $0x1] sm:$0x1]
        %v142 = vstv %s137
        %v143 = vmul.f32 %v142, %v141
        %v144 = vadd.f32 %v140, %v143
        %145 = vst [vmem:[%s135] sm:$0x1] %v144
        %s146 = sand.u32 %s57, 1
        %s147 = scalar_lea.sflag [#allocation6], %s146
        %s148 = sand.u32 %s57, 1
        %s149 = scalar_lea.vmem [#allocation7], %s148
        // Predicated region
        $region29: #{tpu_custom_call.1} parent=23 // pred_check
          %p150 = pneg %p67
        $region30: #{tpu_custom_call.1} parent=23 // pred_check_branch
          %152 = sbr.rel (%p150) target = $region32
        $region31: #{tpu_custom_call.1} parent=23 // pred_region
          %s154 = ssub.s32 16, 16
          %155 = vsyncadd %s147, %s154
          %s156 = smul.addr %s23, 16
          %s157 = scalar_lea.hbm %s2, %s156
          %s159 = sshll.u32 %s149, 4
          %s160 = int_to_ptr.vmem [resolvable:$true] %s159
          %162 = dma.vmem_to_hbm [thread:$0]  %s160, 16, %s157, %s147
        $region32: #{tpu_custom_call.1} parent=23 // pred_fallthru
          _
      $region24: #{tpu_custom_call.1} parent=5 // pred_fallthru
        _
      %p163 = scmp.le.s32.totalorder 2, %s18
      // Predicated region
      $region33: #{tpu_custom_call.1} parent=5 // pred_check
        %p164 = pneg %p163
      $region34: #{tpu_custom_call.1} parent=5 // pred_check_branch
        %166 = sbr.rel (%p164) target = $region36
      $region35: #{tpu_custom_call.1} parent=5 // pred_region
        %s167 = ssub.s32 %s18, 2
        // Predicated region
        $region37: #{tpu_custom_call.1} parent=35 // pred_check
          %p168 = pneg %p73
        $region38: #{tpu_custom_call.1} parent=35 // pred_check_branch
          %170 = sbr.rel (%p168) target = $region40
        $region39: #{tpu_custom_call.1} parent=35 // pred_region
          %s171 = sand.u32 %s58, 1
          %s172 = scalar_lea.sflag [#allocation6], %s171
          %s173 = sand.u32 %s58, 1
          %s174 = scalar_lea.vmem [#allocation7], %s173
          %175 = dma.done %s172, 16
        $region40: #{tpu_custom_call.1} parent=35 // pred_fallthru
          _
      $region36: #{tpu_custom_call.1} parent=5 // pred_fallthru
        _
    $region6: #{tpu_custom_call.1} parent=1 // loop_footer
      %s22 = sadd.s32 1, %s18
    $region7: #{tpu_custom_call.1} parent=1 // loop_footer_branch
      %17 = sbr.rel target = $region3
    $region8: #{tpu_custom_call.1} parent=1 // loop_exit
      _
    %176 = vsyncpa [#allocation5], 1
    %s177 = scalar_lea.sflag [#allocation5], 1
    %178 = vsyncpa %s177, 1
    %179 = vsyncpa [#allocation6], 1
    %s180 = scalar_lea.sflag [#allocation6], 1
    %181 = vsyncpa %s180, 1

</llo_original>
